<compile_context>
chip_gen: v6e
topology: v6e:2x2x1
jax: 0.10.0
libtpu: 0.0.40
codegen_flags: <defaults>
</compile_context>

<pallas_src>
import math

import jax
import jax.numpy as jnp
from jax import lax
from jax.experimental import pallas as pl
from jax.experimental.pallas import tpu as pltpu


_LANE = 128    # lane width (last dim)
_SUBLANE = 8   # f32 sublane width (second-to-last dim)


def _round_up(v: int, m: int) -> int:
    return ((v + m - 1) // m) * m


def _vmem_capacity_bytes() -> int:
    try:
        return int(pltpu.get_tpu_info().vmem_capacity_bytes)
    except Exception:
        return 64 * 1024 * 1024      # conservative default (v7x per-core VMEM)


def _choose_seq_tile(seq: int, per_step_bytes: int, budget_bytes: int,
                     max_seq_tile) -> int:
    """Largest divisor of seq whose double-buffered chunk fits the budget."""
    best = 1
    for d in range(1, seq + 1):
        if seq % d:
            continue
        if max_seq_tile is not None and d > max_seq_tile:
            continue
        if d * per_step_bytes <= budget_bytes:
            best = max(best, d)
    return best


def _make_lstm_kernel(t_chunk: int, hp: int, unroll: int, compute_dtype):
    """Recurrent part only: z_t = U_t + h_{t-1} @ W_h, gates, state update."""

    def kernel(u_ref, wh_ref, h0_ref, c0_ref,
               hseq_ref, h_out_ref, c_out_ref, h_sc, c_sc):
        s = pl.program_id(1)          # seq-chunk index (innermost grid axis)

        @pl.when(s == 0)
        def _():
            # Start of this batch tile's sequence: load initial states.
            h_sc[...] = h0_ref[...]
            c_sc[...] = c0_ref[...]

        wh = wh_ref[...]              # (Hp, 4Hp), loop-invariant, compute_dtype

        def step(t, carry):
            h, c = carry
            # (Bt, 4Hp); hoisted input projection + bias already folded into U.
            z = u_ref[t] + jnp.dot(h.astype(compute_dtype), wh,
                                   preferred_element_type=jnp.float32)
            # Gate order [i, f, g, o].  Hp is a multiple of 128, so each slice
            # is a lane-aligned re-view (no cross-lane shuffles).
            # sigmoid(x) = 0.5*(1 + tanh(0.5*x)): 1 EUP op/gate instead of
            # exp + reciprocal on the serial chain.
            i_t = 0.5 * (1.0 + jnp.tanh(0.5 * z[:, 0 * hp:1 * hp]))
            f_t = 0.5 * (1.0 + jnp.tanh(0.5 * z[:, 1 * hp:2 * hp]))
            g_t = jnp.tanh(z[:, 2 * hp:3 * hp])
            o_t = 0.5 * (1.0 + jnp.tanh(0.5 * z[:, 3 * hp:4 * hp]))
            c_n = f_t * c + i_t * g_t
            h_n = o_t * jnp.tanh(c_n)
            hseq_ref[t] = h_n.astype(hseq_ref.dtype)   # lane-dense store
            return h_n, c_n

        h_T, c_T = lax.fori_loop(0, t_chunk, step,
                                 (h_sc[...], c_sc[...]), unroll=unroll)
        # Carry across seq chunks in f32 VMEM scratch.
        h_sc[...] = h_T
        c_sc[...] = c_T

        @pl.when(s == pl.num_programs(1) - 1)
        def _():
            # Final states written exactly once, at the last seq chunk.
            h_out_ref[...] = h_T.astype(h_out_ref.dtype)
            c_out_ref[...] = c_T.astype(c_out_ref.dtype)

    return kernel


def naive_lstm_forward(x,
                       W_ii, W_hi, b_i,
                       W_if, W_hf, b_f,
                       W_ig, W_hg, b_g,
                       W_io, W_ho, b_o,
                       init_states=None,
                       recurrent_dtype=jnp.bfloat16,
                       unroll: int = 4,
                       max_seq_tile=None):
    """Forward pass of NaiveLSTM.  x: (seq, bs, input_sz)."""
    seq, bs, in_sz = x.shape
    H = W_hi.shape[0]
    f32 = jnp.float32

    Hp = _round_up(H, _LANE)                       # lane-pad hidden size
    # Split the (padded) batch into 2 "parallel" tiles when it is big enough,
    # so a 2-TensorCore chip (v7x) runs independent batch shards.
    n_btiles = 2 if bs >= 16 else 1
    Bp = _round_up(bs, _SUBLANE * n_btiles)        # sublane-pad batch
    Bt = Bp // n_btiles
    H4p = 4 * Hp

    def pad_i(w):   # (in, H) -> (in, Hp)
        return jnp.pad(w.astype(f32), ((0, 0), (0, Hp - H)))

    def pad_h(w):   # (H, H) -> (Hp, Hp)
        return jnp.pad(w.astype(f32), ((0, Hp - H), (0, Hp - H)))

    def pad_b(bv):  # (H,) -> (Hp,)
        return jnp.pad(bv.astype(f32), (0, Hp - H))

    # Fused + per-gate-padded parameters, gate order [i, f, g, o].
    W_i = jnp.concatenate([pad_i(W_ii), pad_i(W_if), pad_i(W_ig), pad_i(W_io)], axis=1)
    W_h = jnp.concatenate([pad_h(W_hi), pad_h(W_hf), pad_h(W_hg), pad_h(W_ho)], axis=1)
    W_h = W_h.astype(recurrent_dtype)              # bf16 weights, f32 accumulate
    b = jnp.concatenate([pad_b(b_i), pad_b(b_f), pad_b(b_g), pad_b(b_o)])[None, :]

    # Batch padding (padded rows are computed but sliced off at the end).
    x_p = jnp.pad(x.astype(f32), ((0, 0), (0, Bp - bs), (0, 0)))

    # ---- Hoisted, non-recurrent input projection: one big MXU matmul. ----
    U = (jnp.dot(x_p.reshape(seq * Bp, in_sz), W_i,
                 preferred_element_type=f32) + b).reshape(seq, Bp, H4p)

    # Initial states.
    if init_states is None:
        h0 = jnp.zeros((Bp, Hp), f32)
        c0 = jnp.zeros((Bp, Hp), f32)
    else:
        h_init, c_init = init_states

        def expand(s0):
            s0 = jnp.asarray(s0, f32)
            if s0.ndim == 3 and s0.shape[0] == 1:
                s0 = s0[0]
            if s0.ndim == 1:
                s0 = jnp.broadcast_to(s0, (bs, H))
            if s0.shape != (bs, H):
                raise ValueError(f"init state shape {s0.shape} != ({bs}, {H})")
            return jnp.zeros((Bp, Hp), f32).at[:bs, :H].set(s0)

        h0 = expand(h_init)
        c0 = expand(c_init)

    # ---- Seq-tile / VMEM planning. ----
    out_dt = x.dtype
    out_isz = jnp.dtype(out_dt).itemsize
    wh_isz = jnp.dtype(recurrent_dtype).itemsize
    # Double-buffered per-timestep slabs: U chunk in + hidden_seq chunk out.
    per_step_bytes = 2 * Bt * H4p * 4 + 2 * Bt * Hp * out_isz
    fixed_bytes = (2 * Hp * H4p * wh_isz           # W_h (double-buffered)
                   + 10 * Bt * Hp * 4)             # h0/c0/h_T/c_T (2x) + scratch
    vmem_cap = _vmem_capacity_bytes()
    budget = max(per_step_bytes, int(0.5 * vmem_cap) - fixed_bytes)
    T = _choose_seq_tile(seq, per_step_bytes, budget, max_seq_tile)
    n_chunks = seq // T

    total_bytes = T * per_step_bytes + fixed_bytes
    vmem_limit = int(min(max(int(1.25 * total_bytes) + (2 << 20), 32 << 20),
                         vmem_cap))

    unroll_eff = max(1, min(int(unroll), T))
    kernel = _make_lstm_kernel(T, Hp, unroll_eff, recurrent_dtype)

    cost = pl.CostEstimate(
        flops=2 * seq * Bp * Hp * H4p,                     # recurrent h @ W_h
        transcendentals=5 * seq * Bp * Hp,                 # 5 tanh / elem / step
        bytes_accessed=(seq * Bp * H4p * 4 + Hp * H4p * wh_isz
                        + seq * Bp * Hp * out_isz + 4 * Bp * Hp * 4),
    )

    hseq_p, h_p, c_p = pl.pallas_call(
        kernel,
        out_shape=(
            jax.ShapeDtypeStruct((seq, Bp, Hp), out_dt),
            jax.ShapeDtypeStruct((Bp, Hp), out_dt),
            jax.ShapeDtypeStruct((Bp, Hp), out_dt),
        ),
        grid_spec=pltpu.PrefetchScalarGridSpec(
            num_scalar_prefetch=0,
            # (independent batch tiles, sequential seq chunks)
            grid=(n_btiles, n_chunks),
            in_specs=[
                pl.BlockSpec((T, Bt, H4p), lambda bt, s: (s, bt, 0)),  # U chunk
                pl.BlockSpec((Hp, H4p), lambda bt, s: (0, 0)),         # W_h (resident)
                pl.BlockSpec((Bt, Hp), lambda bt, s: (bt, 0)),         # h0
                pl.BlockSpec((Bt, Hp), lambda bt, s: (bt, 0)),         # c0
            ],
            out_specs=[
                pl.BlockSpec((T, Bt, Hp), lambda bt, s: (s, bt, 0)),   # hidden_seq
                pl.BlockSpec((Bt, Hp), lambda bt, s: (bt, 0)),         # h_T
                pl.BlockSpec((Bt, Hp), lambda bt, s: (bt, 0)),         # c_T
            ],
            scratch_shapes=[pltpu.VMEM((Bt, Hp), f32),                 # h carry
                            pltpu.VMEM((Bt, Hp), f32)],                # c carry
        ),
        compiler_params=pltpu.CompilerParams(
            dimension_semantics=("parallel", "arbitrary"),
            vmem_limit_bytes=vmem_limit),
        cost_estimate=cost,
    )(U, W_h, h0, c0)

    # Strip batch / hidden padding.
    hseq = hseq_p[:, :bs, :H]
    h_T = h_p[:bs, :H]
    c_T = c_p[:bs, :H]
    return hseq, (h_T, c_T)


def _xavier_uniform(key, shape, dtype=jnp.float32):
    fan_in, fan_out = shape
    limit = math.sqrt(6.0 / (fan_in + fan_out))
    return jax.random.uniform(key, shape, dtype, minval=-limit, maxval=limit)


def _reference_lstm(x, W_ii, W_hi, b_i, W_if, W_hf, b_f,
                    W_ig, W_hg, b_g, W_io, W_ho, b_o):
    """Pure-JAX reference matching the PyTorch loop."""
    seq, bs, _ = x.shape
    H = W_hi.shape[0]
    h = jnp.zeros((bs, H), x.dtype)
    c = jnp.zeros((bs, H), x.dtype)
    outs = []
    for t in range(seq):
        x_t = x[t]
        i = jax.nn.sigmoid(x_t @ W_ii + h @ W_hi + b_i)
        f = jax.nn.sigmoid(x_t @ W_if + h @ W_hf + b_f)
        g = jnp.tanh(x_t @ W_ig + h @ W_hg + b_g)
        o = jax.nn.sigmoid(x_t @ W_io + h @ W_ho + b_o)
        c = f * c + i * g
        h = o * jnp.tanh(c)
        outs.append(h)
    return jnp.stack(outs, axis=0), (h, c)


if __name__ == "__main__":
    input_sz, hidden_sz = 16, 32

    root = jax.random.PRNGKey(0)
    kx, kx2, kii, khi, kif, khf, kig, khg, kio, kho = jax.random.split(root, 10)

    # Parameters (xavier_uniform for matrices, zeros for biases), as in the module.
    W_ii = _xavier_uniform(kii, (input_sz, hidden_sz))
    W_if = _xavier_uniform(kif, (input_sz, hidden_sz))
    W_ig = _xavier_uniform(kig, (input_sz, hidden_sz))
    W_io = _xavier_uniform(kio, (input_sz, hidden_sz))
    W_hi = _xavier_uniform(khi, (hidden_sz, hidden_sz))
    W_hf = _xavier_uniform(khf, (hidden_sz, hidden_sz))
    W_hg = _xavier_uniform(khg, (hidden_sz, hidden_sz))
    W_ho = _xavier_uniform(kho, (hidden_sz, hidden_sz))
    b_i = jnp.zeros((hidden_sz,), jnp.float32)
    b_f = jnp.zeros((hidden_sz,), jnp.float32)
    b_g = jnp.zeros((hidden_sz,), jnp.float32)
    b_o = jnp.zeros((hidden_sz,), jnp.float32)

    params = (W_ii, W_hi, b_i, W_if, W_hf, b_f,
              W_ig, W_hg, b_g, W_io, W_ho, b_o)

    def check(seq, bs, recurrent_dtype, max_seq_tile, tol, key):
        x = jax.random.normal(key, (seq, bs, input_sz), jnp.float32)
        hseq, (h_T, c_T) = naive_lstm_forward(
            x, *params, recurrent_dtype=recurrent_dtype,
            max_seq_tile=max_seq_tile)
        jax.block_until_ready((hseq, h_T, c_T))
        hseq_r, (h_r, c_r) = _reference_lstm(x, *params)
        assert hseq.shape == (seq, bs, hidden_sz)
        err = float(jnp.max(jnp.abs(hseq - hseq_r)))
        assert jnp.allclose(hseq, hseq_r, atol=tol, rtol=tol), err
        assert jnp.allclose(h_T, h_r, atol=tol, rtol=tol)
        assert jnp.allclose(c_T, c_r, atol=tol, rtol=tol)

    # 1) Full-f32 recurrent matmul, forced 2-timestep seq chunks (exercises the
    #    h/c carry across grid steps) -> tight tolerance.
    check(seq=8, bs=2, recurrent_dtype=jnp.float32, max_seq_tile=2,
          tol=1e-4, key=kx)
    # 2) Default bf16 recurrent weights (f32 accumulation), auto seq tile.
    check(seq=8, bs=2, recurrent_dtype=jnp.bfloat16, max_seq_tile=None,
          tol=3e-2, key=kx)
    # 3) Larger batch -> two batch tiles on the "parallel" grid axis.
    check(seq=8, bs=16, recurrent_dtype=jnp.bfloat16, max_seq_tile=4,
          tol=3e-2, key=kx2)

    print("KERNEL_OK")
</pallas_src>

<mosaic_0001>
module attributes {stable_mosaic.version = 11 : i64} {
  func.func @kernel(%arg0: i32, %arg1: i32, %arg2: memref<2x8x512xf32, #tpu.memory_space<vmem>>, %arg3: memref<128x512xf32, #tpu.memory_space<vmem>>, %arg4: memref<8x128xf32, #tpu.memory_space<vmem>>, %arg5: memref<8x128xf32, #tpu.memory_space<vmem>>, %arg6: memref<2x8x128xf32, #tpu.memory_space<vmem>>, %arg7: memref<8x128xf32, #tpu.memory_space<vmem>>, %arg8: memref<8x128xf32, #tpu.memory_space<vmem>>, %arg9: memref<8x128xf32, #tpu.memory_space<vmem>>, %arg10: memref<8x128xf32, #tpu.memory_space<vmem>>) attributes {dimension_semantics = [#tpu.dimension_semantics<parallel>, #tpu.dimension_semantics<arbitrary>], iteration_bounds = array<i64: 1, 4>, scalar_prefetch = 0 : i64, scratch_operands = 2 : i64, tpu.core_type = #tpu.core_type<tc>, window_params = [{transform_indices = @transform_0, window_bounds = array<i64: 2, 8, 512>}, {pipeline_mode = #tpu.pipeline_mode<synchronous>, transform_indices = @transform_1, window_bounds = array<i64: 128, 512>}, {transform_indices = @transform_2, window_bounds = array<i64: 8, 128>}, {transform_indices = @transform_3, window_bounds = array<i64: 8, 128>}, {transform_indices = @transform_4, window_bounds = array<i64: 2, 8, 128>}, {transform_indices = @transform_5, window_bounds = array<i64: 8, 128>}, {transform_indices = @transform_6, window_bounds = array<i64: 8, 128>}]} {
    %c0_i32 = arith.constant 0 : i32
    %0 = arith.cmpi eq, %arg1, %c0_i32 : i32
    %1 = arith.extui %0 : i1 to i32
    %c0_i32_0 = arith.constant 0 : i32
    %2 = arith.cmpi ne, %1, %c0_i32_0 : i32
    scf.if %2 {
      %c0_39 = arith.constant 0 : index
      %c0_40 = arith.constant 0 : index
      %91 = vector.load %arg4[%c0_39, %c0_40] : memref<8x128xf32, #tpu.memory_space<vmem>>, vector<8x128xf32>
      %c0_41 = arith.constant 0 : index
      %c0_42 = arith.constant 0 : index
      %92 = vector.load %arg9[%c0_41, %c0_42] : memref<8x128xf32, #tpu.memory_space<vmem>>, vector<8x128xf32>
      tpu.vector_store %arg9[%c0_41, %c0_42], %91 {strides = array<i32>} : memref<8x128xf32, #tpu.memory_space<vmem>>, vector<8x128xf32>,
      %c0_43 = arith.constant 0 : index
      %c0_44 = arith.constant 0 : index
      %93 = vector.load %arg5[%c0_43, %c0_44] : memref<8x128xf32, #tpu.memory_space<vmem>>, vector<8x128xf32>
      %c0_45 = arith.constant 0 : index
      %c0_46 = arith.constant 0 : index
      %94 = vector.load %arg10[%c0_45, %c0_46] : memref<8x128xf32, #tpu.memory_space<vmem>>, vector<8x128xf32>
      tpu.vector_store %arg10[%c0_45, %c0_46], %93 {strides = array<i32>} : memref<8x128xf32, #tpu.memory_space<vmem>>, vector<8x128xf32>,
    } else {
    }
    %c0 = arith.constant 0 : index
    %c0_1 = arith.constant 0 : index
    %3 = vector.load %arg3[%c0, %c0_1] : memref<128x512xf32, #tpu.memory_space<vmem>>, vector<128x512xf32>
    %c0_2 = arith.constant 0 : index
    %c0_3 = arith.constant 0 : index
    %4 = vector.load %arg9[%c0_2, %c0_3] : memref<8x128xf32, #tpu.memory_space<vmem>>, vector<8x128xf32>
    %c0_4 = arith.constant 0 : index
    %c0_5 = arith.constant 0 : index
    %5 = vector.load %arg10[%c0_4, %c0_5] : memref<8x128xf32, #tpu.memory_space<vmem>>, vector<8x128xf32>
    %c0_i32_6 = arith.constant 0 : i32
    %6 = arith.index_cast %c0_i32_6 : i32 to index
    %c0_7 = arith.constant 0 : index
    %c0_8 = arith.constant 0 : index
    %7 = vector.load %arg2[%6, %c0_7, %c0_8] : memref<2x8x512xf32, #tpu.memory_space<vmem>>, vector<1x8x512xf32>
    %8 = vector.shape_cast %7 : vector<1x8x512xf32> to vector<8x512xf32>
    %cst = arith.constant dense<0.000000e+00> : vector<8x512xf32>
    %9 = tpu.matmul %4, %3, %cst {dimension_numbers = #tpu.dot_dimension_numbers<[1], [0], [0], [1], [0, 0, 1, 1], [], []>} : vector<8x128xf32>, vector<128x512xf32>, vector<8x512xf32> -> vector<8x512xf32>
    %10 = arith.addf %8, %9 : vector<8x512xf32>
    %11 = vector.extract_strided_slice %10 {offsets = [0, 0], sizes = [8, 128], strides = [1, 1]} : vector<8x512xf32> to vector<8x128xf32>
    %cst_9 = arith.constant 5.000000e-01 : f32
    %12 = vector.broadcast %cst_9 : f32 to vector<8x128xf32>
    %13 = arith.mulf %12, %11 : vector<8x128xf32>
    %14 = math.tanh %13 : vector<8x128xf32>
    %cst_10 = arith.constant 1.000000e+00 : f32
    %15 = vector.broadcast %cst_10 : f32 to vector<8x128xf32>
    %16 = arith.addf %15, %14 : vector<8x128xf32>
    %cst_11 = arith.constant 5.000000e-01 : f32
    %17 = vector.broadcast %cst_11 : f32 to vector<8x128xf32>
    %18 = arith.mulf %17, %16 : vector<8x128xf32>
    %19 = vector.extract_strided_slice %10 {offsets = [0, 128], sizes = [8, 128], strides = [1, 1]} : vector<8x512xf32> to vector<8x128xf32>
    %cst_12 = arith.constant 5.000000e-01 : f32
    %20 = vector.broadcast %cst_12 : f32 to vector<8x128xf32>
    %21 = arith.mulf %20, %19 : vector<8x128xf32>
    %22 = math.tanh %21 : vector<8x128xf32>
    %cst_13 = arith.constant 1.000000e+00 : f32
    %23 = vector.broadcast %cst_13 : f32 to vector<8x128xf32>
    %24 = arith.addf %23, %22 : vector<8x128xf32>
    %cst_14 = arith.constant 5.000000e-01 : f32
    %25 = vector.broadcast %cst_14 : f32 to vector<8x128xf32>
    %26 = arith.mulf %25, %24 : vector<8x128xf32>
    %27 = vector.extract_strided_slice %10 {offsets = [0, 256], sizes = [8, 128], strides = [1, 1]} : vector<8x512xf32> to vector<8x128xf32>
    %28 = math.tanh %27 : vector<8x128xf32>
    %29 = vector.extract_strided_slice %10 {offsets = [0, 384], sizes = [8, 128], strides = [1, 1]} : vector<8x512xf32> to vector<8x128xf32>
    %cst_15 = arith.constant 5.000000e-01 : f32
    %30 = vector.broadcast %cst_15 : f32 to vector<8x128xf32>
    %31 = arith.mulf %30, %29 : vector<8x128xf32>
    %32 = math.tanh %31 : vector<8x128xf32>
    %cst_16 = arith.constant 1.000000e+00 : f32
    %33 = vector.broadcast %cst_16 : f32 to vector<8x128xf32>
    %34 = arith.addf %33, %32 : vector<8x128xf32>
    %cst_17 = arith.constant 5.000000e-01 : f32
    %35 = vector.broadcast %cst_17 : f32 to vector<8x128xf32>
    %36 = arith.mulf %35, %34 : vector<8x128xf32>
    %37 = arith.mulf %26, %5 : vector<8x128xf32>
    %38 = arith.mulf %18, %28 : vector<8x128xf32>
    %39 = arith.addf %37, %38 : vector<8x128xf32>
    %40 = math.tanh %39 : vector<8x128xf32>
    %41 = arith.mulf %36, %40 : vector<8x128xf32>
    %42 = arith.index_cast %c0_i32_6 : i32 to index
    %c0_18 = arith.constant 0 : index
    %c0_19 = arith.constant 0 : index
    %43 = vector.load %arg6[%42, %c0_18, %c0_19] : memref<2x8x128xf32, #tpu.memory_space<vmem>>, vector<1x8x128xf32>
    %44 = vector.shape_cast %43 : vector<1x8x128xf32> to vector<8x128xf32>
    %45 = vector.shape_cast %41 : vector<8x128xf32> to vector<1x8x128xf32>
    tpu.vector_store %arg6[%42, %c0_18, %c0_19], %45 {strides = array<i32>} : memref<2x8x128xf32, #tpu.memory_space<vmem>>, vector<1x8x128xf32>,
    %c1_i32 = arith.constant 1 : i32
    %46 = arith.index_cast %c1_i32 : i32 to index
    %c0_20 = arith.constant 0 : index
    %c0_21 = arith.constant 0 : index
    %47 = vector.load %arg2[%46, %c0_20, %c0_21] : memref<2x8x512xf32, #tpu.memory_space<vmem>>, vector<1x8x512xf32>
    %48 = vector.shape_cast %47 : vector<1x8x512xf32> to vector<8x512xf32>
    %cst_22 = arith.constant dense<0.000000e+00> : vector<8x512xf32>
    %49 = tpu.matmul %41, %3, %cst_22 {dimension_numbers = #tpu.dot_dimension_numbers<[1], [0], [0], [1], [0, 0, 1, 1], [], []>} : vector<8x128xf32>, vector<128x512xf32>, vector<8x512xf32> -> vector<8x512xf32>
    %50 = arith.addf %48, %49 : vector<8x512xf32>
    %51 = vector.extract_strided_slice %50 {offsets = [0, 0], sizes = [8, 128], strides = [1, 1]} : vector<8x512xf32> to vector<8x128xf32>
    %cst_23 = arith.constant 5.000000e-01 : f32
    %52 = vector.broadcast %cst_23 : f32 to vector<8x128xf32>
    %53 = arith.mulf %52, %51 : vector<8x128xf32>
    %54 = math.tanh %53 : vector<8x128xf32>
    %cst_24 = arith.constant 1.000000e+00 : f32
    %55 = vector.broadcast %cst_24 : f32 to vector<8x128xf32>
    %56 = arith.addf %55, %54 : vector<8x128xf32>
    %cst_25 = arith.constant 5.000000e-01 : f32
    %57 = vector.broadcast %cst_25 : f32 to vector<8x128xf32>
    %58 = arith.mulf %57, %56 : vector<8x128xf32>
    %59 = vector.extract_strided_slice %50 {offsets = [0, 128], sizes = [8, 128], strides = [1, 1]} : vector<8x512xf32> to vector<8x128xf32>
    %cst_26 = arith.constant 5.000000e-01 : f32
    %60 = vector.broadcast %cst_26 : f32 to vector<8x128xf32>
    %61 = arith.mulf %60, %59 : vector<8x128xf32>
    %62 = math.tanh %61 : vector<8x128xf32>
    %cst_27 = arith.constant 1.000000e+00 : f32
    %63 = vector.broadcast %cst_27 : f32 to vector<8x128xf32>
    %64 = arith.addf %63, %62 : vector<8x128xf32>
    %cst_28 = arith.constant 5.000000e-01 : f32
    %65 = vector.broadcast %cst_28 : f32 to vector<8x128xf32>
    %66 = arith.mulf %65, %64 : vector<8x128xf32>
    %67 = vector.extract_strided_slice %50 {offsets = [0, 256], sizes = [8, 128], strides = [1, 1]} : vector<8x512xf32> to vector<8x128xf32>
    %68 = math.tanh %67 : vector<8x128xf32>
    %69 = vector.extract_strided_slice %50 {offsets = [0, 384], sizes = [8, 128], strides = [1, 1]} : vector<8x512xf32> to vector<8x128xf32>
    %cst_29 = arith.constant 5.000000e-01 : f32
    %70 = vector.broadcast %cst_29 : f32 to vector<8x128xf32>
    %71 = arith.mulf %70, %69 : vector<8x128xf32>
    %72 = math.tanh %71 : vector<8x128xf32>
    %cst_30 = arith.constant 1.000000e+00 : f32
    %73 = vector.broadcast %cst_30 : f32 to vector<8x128xf32>
    %74 = arith.addf %73, %72 : vector<8x128xf32>
    %cst_31 = arith.constant 5.000000e-01 : f32
    %75 = vector.broadcast %cst_31 : f32 to vector<8x128xf32>
    %76 = arith.mulf %75, %74 : vector<8x128xf32>
    %77 = arith.mulf %66, %39 : vector<8x128xf32>
    %78 = arith.mulf %58, %68 : vector<8x128xf32>
    %79 = arith.addf %77, %78 : vector<8x128xf32>
    %80 = math.tanh %79 : vector<8x128xf32>
    %81 = arith.mulf %76, %80 : vector<8x128xf32>
    %82 = arith.index_cast %c1_i32 : i32 to index
    %c0_32 = arith.constant 0 : index
    %c0_33 = arith.constant 0 : index
    %83 = vector.load %arg6[%82, %c0_32, %c0_33] : memref<2x8x128xf32, #tpu.memory_space<vmem>>, vector<1x8x128xf32>
    %84 = vector.shape_cast %83 : vector<1x8x128xf32> to vector<8x128xf32>
    %85 = vector.shape_cast %81 : vector<8x128xf32> to vector<1x8x128xf32>
    tpu.vector_store %arg6[%82, %c0_32, %c0_33], %85 {strides = array<i32>} : memref<2x8x128xf32, #tpu.memory_space<vmem>>, vector<1x8x128xf32>,
    %c2_i32 = arith.constant 2 : i32
    %c0_34 = arith.constant 0 : index
    %c0_35 = arith.constant 0 : index
    %86 = vector.load %arg9[%c0_34, %c0_35] : memref<8x128xf32, #tpu.memory_space<vmem>>, vector<8x128xf32>
    tpu.vector_store %arg9[%c0_34, %c0_35], %81 {strides = array<i32>} : memref<8x128xf32, #tpu.memory_space<vmem>>, vector<8x128xf32>,
    %c0_36 = arith.constant 0 : index
    %c0_37 = arith.constant 0 : index
    %87 = vector.load %arg10[%c0_36, %c0_37] : memref<8x128xf32, #tpu.memory_space<vmem>>, vector<8x128xf32>
    tpu.vector_store %arg10[%c0_36, %c0_37], %79 {strides = array<i32>} : memref<8x128xf32, #tpu.memory_space<vmem>>, vector<8x128xf32>,
    %c3_i32 = arith.constant 3 : i32
    %88 = arith.cmpi eq, %arg1, %c3_i32 : i32
    %89 = arith.extui %88 : i1 to i32
    %c0_i32_38 = arith.constant 0 : i32
    %90 = arith.cmpi ne, %89, %c0_i32_38 : i32
    scf.if %90 {
      %c0_39 = arith.constant 0 : index
      %c0_40 = arith.constant 0 : index
      %91 = vector.load %arg7[%c0_39, %c0_40] : memref<8x128xf32, #tpu.memory_space<vmem>>, vector<8x128xf32>
      tpu.vector_store %arg7[%c0_39, %c0_40], %81 {strides = array<i32>} : memref<8x128xf32, #tpu.memory_space<vmem>>, vector<8x128xf32>,
      %c0_41 = arith.constant 0 : index
      %c0_42 = arith.constant 0 : index
      %92 = vector.load %arg8[%c0_41, %c0_42] : memref<8x128xf32, #tpu.memory_space<vmem>>, vector<8x128xf32>
      tpu.vector_store %arg8[%c0_41, %c0_42], %79 {strides = array<i32>} : memref<8x128xf32, #tpu.memory_space<vmem>>, vector<8x128xf32>,
    } else {
    }
    return
  }
  func.func @transform_0(%arg0: i32, %arg1: i32) -> (i32, i32, i32) {
    %c0_i32 = arith.constant 0 : i32
    %c0_i32_0 = arith.constant 0 : i32
    return %arg1, %arg0, %c0_i32 : i32, i32, i32
  }
  func.func @transform_1(%arg0: i32, %arg1: i32) -> (i32, i32) {
    %c0_i32 = arith.constant 0 : i32
    %c0_i32_0 = arith.constant 0 : i32
    %c0_i32_1 = arith.constant 0 : i32
    return %c0_i32, %c0_i32_0 : i32, i32
  }
  func.func @transform_2(%arg0: i32, %arg1: i32) -> (i32, i32) {
    %c0_i32 = arith.constant 0 : i32
    %c0_i32_0 = arith.constant 0 : i32
    return %arg0, %c0_i32 : i32, i32
  }
  func.func @transform_3(%arg0: i32, %arg1: i32) -> (i32, i32) {
    %c0_i32 = arith.constant 0 : i32
    %c0_i32_0 = arith.constant 0 : i32
    return %arg0, %c0_i32 : i32, i32
  }
  func.func @transform_4(%arg0: i32, %arg1: i32) -> (i32, i32, i32) {
    %c0_i32 = arith.constant 0 : i32
    %c0_i32_0 = arith.constant 0 : i32
    return %arg1, %arg0, %c0_i32 : i32, i32, i32
  }
  func.func @transform_5(%arg0: i32, %arg1: i32) -> (i32, i32) {
    %c0_i32 = arith.constant 0 : i32
    %c0_i32_0 = arith.constant 0 : i32
    return %arg0, %c0_i32 : i32, i32
  }
  func.func @transform_6(%arg0: i32, %arg1: i32) -> (i32, i32) {
    %c0_i32 = arith.constant 0 : i32
    %c0_i32_0 = arith.constant 0 : i32
    return %arg0, %c0_i32 : i32, i32
  }
}

</mosaic_0001>

<llo_original>
// kernel: tpu_custom_call.1
$region0: #{tpu_custom_call.1}
  #allocation0 [shape = 'u32[]', space=smem, size = 0x4, offset = 0x4, fixed_abs, tag = 'smem constant byte address 0x4 - core index']
  #allocation1 [shape = 'u32[144,128]{1,0:T(1,128)}', space=vmem, size = 0x12000, scoped, tag = 'internal scratch']
  #allocation2 [shape = 'f32[8,128]{1,0:T(8,128)}', space=vmem, size = 0x1000, scoped, tag = 'scratch operand']
  #allocation3 [shape = 'f32[8,128]{1,0:T(8,128)}', space=vmem, size = 0x1000, scoped, tag = 'scratch operand']
  %s0 = inlined_call_operand.hbm [shape: f32[8,8,512], index: 0, kind: input, shape index: {}]
  %s1 = inlined_call_operand.hbm [shape: f32[128,512], index: 1, kind: input, shape index: {}]
  %s2 = inlined_call_operand.hbm [shape: f32[8,128], index: 2, kind: input, shape index: {}]
  %s3 = inlined_call_operand.hbm [shape: f32[8,128], index: 3, kind: input, shape index: {}]
  %s4 = inlined_call_operand.hbm [shape: f32[8,8,128], index: 4, kind: output, shape index: {0}]
  %s5 = inlined_call_operand.hbm [shape: f32[8,128], index: 5, kind: output, shape index: {1}]
  %s6 = inlined_call_operand.hbm [shape: f32[8,128], index: 6, kind: output, shape index: {2}]
  %7 = xla_tuple %s4, %s5, %s6
  %s8 = sld [smem:[#allocation0]]
  $region89: #{tpu_custom_call.1} parent=0
    _
  %s10 = ssub.s32 1, %s8
  %s11 = scalar_select 0, %s10, %s8
  $region1: #{tpu_custom_call.1} parent=0
    #allocation4 [shape = 'u8[65536]{0}', space=vmem, size = 0x10000, scoped, tag = 'input window, operand 0']
    #allocation5 [shape = 's32[2]{0}', space=sflag, size = 0x8, scoped, tag = 'scoped memory for tpu_custom_call.1']
    #allocation6 [shape = 's32[2]{0}', space=sflag, size = 0x8, scoped, tag = 'scoped memory for tpu_custom_call.1']
    #allocation7 [shape = 'u8[262144]{0}', space=vmem, size = 0x40000, scoped, tag = 'input window, operand 1, single buffered']
    #allocation8 [shape = 's32[1]{0}', space=sflag, size = 0x4, scoped, tag = 'scoped memory for tpu_custom_call.1']
    #allocation9 [shape = 'u8[4096]{0}', space=vmem, size = 0x1000, scoped, tag = 'input window, operand 2, single buffered']
    #allocation10 [shape = 'u8[4096]{0}', space=vmem, size = 0x1000, scoped, tag = 'input window, operand 3, single buffered']
    #allocation11 [shape = 's32[1]{0}', space=sflag, size = 0x4, scoped, tag = 'scoped memory for tpu_custom_call.1']
    #allocation12 [shape = 'u8[16384]{0}', space=vmem, size = 0x4000, scoped, tag = 'output window, operand 0']
    #allocation13 [shape = 'u8[4096]{0}', space=vmem, size = 0x1000, scoped, tag = 'output window, operand 1, single buffered']
    #allocation14 [shape = 's32[1]{0}', space=sflag, size = 0x4, scoped, tag = 'scoped memory for tpu_custom_call.1']
    #allocation15 [shape = 'u8[4096]{0}', space=vmem, size = 0x1000, scoped, tag = 'output window, operand 2, single buffered']
    %12 = vsyncpa [#allocation5], 0
    %s13 = scalar_lea.sflag [#allocation5], 1
    %14 = vsyncpa %s13, 0
    %15 = vsyncpa [#allocation8], 0
    %16 = vsyncpa [#allocation11], 0
    %17 = vsyncpa [#allocation6], 0
    %s18 = scalar_lea.sflag [#allocation6], 1
    %19 = vsyncpa %s18, 0
    %20 = vsyncpa [#allocation14], 0
    loop: start=0, step=1, limit=6
    $region2: #{tpu_custom_call.1} parent=1 // loop_pre_header
      _
    $region3: #{tpu_custom_call.1} parent=1 // loop_header
      %s22 = sphi 0, %s26
      %p23 = scmp.ge.s32.totalorder %s22, 6
      %s29 = sphi 0, %s41
      %s30 = sphi 0, %s37
      %s31 = sphi 0, %s29
      %s32 = sphi 0, %s30
      %s33 = sphi 0, %s31
      %s34 = sphi 0, %s32
      %s46 = sphi 0, %s48
      %s49 = sphi 0, %s46
      %s50 = sphi 0, %s49
      %s66 = sphi 0, %s50
      %s70 = sphi 0, %s70
      %s72 = sphi 0, %s70
      %s73 = sphi 0, %s72
      %s87 = sphi 0, %s73
      %s93 = sphi 0, %s95
      %s96 = sphi 0, %s93
      %s97 = sphi 0, %s96
      %s113 = sphi 0, %s97
      %s119 = sphi 0, %s121
      %s122 = sphi 0, %s119
      %s123 = sphi 0, %s122
      %s139 = sphi 0, %s123
      %s147 = sphi 0, %s149
      %s150 = sphi 0, %s147
      %s151 = sphi 0, %s150
      %s167 = sphi 0, %s151
      %s173 = sphi 0, %s175
      %s176 = sphi 0, %s173
      %s177 = sphi 0, %s176
      %s193 = sphi 0, %s177
      %s199 = sphi 0, %s201
      %s202 = sphi 0, %s199
      %s203 = sphi 0, %s202
      %s219 = sphi 0, %s203
    $region4: #{tpu_custom_call.1} parent=1 // loop_header_branch
      %25 = sbr.rel (%p23) target = $region8
    $region5: #{tpu_custom_call.1} parent=1 // loop_body
      %s27 = ssub.s32 %s22, 1
      %s28 = ssub.s32 %s22, 2
      %s35 = sadd.s32 1, %s30
      %p36 = scmp.ge.s32.totalorder %s35, 4
      %s37 = scalar_select %p36, 0, %s35
      %s38 = sadd.s32 1, %s29
      %s39 = scalar_select %p36, %s38, %s29
      %p40 = scmp.ge.s32.totalorder %s39, 1
      %s41 = scalar_select %p40, 0, %s39
      %s42 = ssub.s32 %s30, %s37
      %s43 = ssub.s32 %s29, %s41
      %s44 = sor.u32 %s42, %s43
      %p45 = scmp.eq.s32.totalorder %s44, 0
      %s47 = sadd.s32 %s46, 1
      %s48 = scalar_select %p45, %s46, %s47
      %p51 = pneg %p45
      %p52 = scmp.eq.s32.totalorder %s22, 3
      %p53 = por %p51, %p52
      %p54 = scmp.ne.s32.totalorder %s46, %s49
      %p55 = scmp.eq.s32.totalorder %s22, 0
      %p56 = por %p54, %p55
      %p57 = scmp.ne.s32.totalorder %s46, %s49
      %p58 = scmp.eq.s32.totalorder %s27, 3
      %p59 = por %p57, %p58
      %p60 = scmp.ne.s32.totalorder %s49, %s50
      %p61 = scmp.eq.s32.totalorder %s27, 0
      %p62 = por %p60, %p61
      %p63 = scmp.ne.s32.totalorder %s49, %s50
      %p64 = scmp.eq.s32.totalorder %s28, 3
      %p65 = por %p63, %p64
      %p67 = scmp.ne.s32.totalorder %s50, %s66
      %p68 = scmp.eq.s32.totalorder %s28, 0
      %p69 = por %p67, %p68
      %s71 = sadd.s32 %s70, 1
      %p74 = scmp.eq.s32.totalorder %s22, 3
      %p75 = scmp.ne.s32.totalorder %s70, %s72
      %p76 = scmp.eq.s32.totalorder %s22, 0
      %p77 = por %p75, %p76
      %p78 = scmp.ne.s32.totalorder %s70, %s72
      %p79 = scmp.eq.s32.totalorder %s27, 3
      %p80 = por %p78, %p79
      %p81 = scmp.ne.s32.totalorder %s72, %s73
      %p82 = scmp.eq.s32.totalorder %s27, 0
      %p83 = por %p81, %p82
      %p84 = scmp.ne.s32.totalorder %s72, %s73
      %p85 = scmp.eq.s32.totalorder %s28, 3
      %p86 = por %p84, %p85
      %p88 = scmp.ne.s32.totalorder %s73, %s87
      %p89 = scmp.eq.s32.totalorder %s28, 0
      %p90 = por %p88, %p89
      %s91 = ssub.s32 %s29, %s41
      %p92 = scmp.eq.s32.totalorder %s91, 0
      %s94 = sadd.s32 %s93, 1
      %s95 = scalar_select %p92, %s93, %s94
      %p98 = pneg %p92
      %p99 = scmp.eq.s32.totalorder %s22, 3
      %p100 = por %p98, %p99
      %p101 = scmp.ne.s32.totalorder %s93, %s96
      %p102 = scmp.eq.s32.totalorder %s22, 0
      %p103 = por %p101, %p102
      %p104 = scmp.ne.s32.totalorder %s93, %s96
      %p105 = scmp.eq.s32.totalorder %s27, 3
      %p106 = por %p104, %p105
      %p107 = scmp.ne.s32.totalorder %s96, %s97
      %p108 = scmp.eq.s32.totalorder %s27, 0
      %p109 = por %p107, %p108
      %p110 = scmp.ne.s32.totalorder %s96, %s97
      %p111 = scmp.eq.s32.totalorder %s28, 3
      %p112 = por %p110, %p111
      %p114 = scmp.ne.s32.totalorder %s97, %s113
      %p115 = scmp.eq.s32.totalorder %s28, 0
      %p116 = por %p114, %p115
      %s117 = ssub.s32 %s29, %s41
      %p118 = scmp.eq.s32.totalorder %s117, 0
      %s120 = sadd.s32 %s119, 1
      %s121 = scalar_select %p118, %s119, %s120
      %p124 = pneg %p118
      %p125 = scmp.eq.s32.totalorder %s22, 3
      %p126 = por %p124, %p125
      %p127 = scmp.ne.s32.totalorder %s119, %s122
      %p128 = scmp.eq.s32.totalorder %s22, 0
      %p129 = por %p127, %p128
      %p130 = scmp.ne.s32.totalorder %s119, %s122
      %p131 = scmp.eq.s32.totalorder %s27, 3
      %p132 = por %p130, %p131
      %p133 = scmp.ne.s32.totalorder %s122, %s123
      %p134 = scmp.eq.s32.totalorder %s27, 0
      %p135 = por %p133, %p134
      %p136 = scmp.ne.s32.totalorder %s122, %s123
      %p137 = scmp.eq.s32.totalorder %s28, 3
      %p138 = por %p136, %p137
      %p140 = scmp.ne.s32.totalorder %s123, %s139
      %p141 = scmp.eq.s32.totalorder %s28, 0
      %p142 = por %p140, %p141
      %s143 = ssub.s32 %s30, %s37
      %s144 = ssub.s32 %s29, %s41
      %s145 = sor.u32 %s143, %s144
      %p146 = scmp.eq.s32.totalorder %s145, 0
      %s148 = sadd.s32 %s147, 1
      %s149 = scalar_select %p146, %s147, %s148
      %p152 = pneg %p146
      %p153 = scmp.eq.s32.totalorder %s22, 3
      %p154 = por %p152, %p153
      %p155 = scmp.ne.s32.totalorder %s147, %s150
      %p156 = scmp.eq.s32.totalorder %s22, 0
      %p157 = por %p155, %p156
      %p158 = scmp.ne.s32.totalorder %s147, %s150
      %p159 = scmp.eq.s32.totalorder %s27, 3
      %p160 = por %p158, %p159
      %p161 = scmp.ne.s32.totalorder %s150, %s151
      %p162 = scmp.eq.s32.totalorder %s27, 0
      %p163 = por %p161, %p162
      %p164 = scmp.ne.s32.totalorder %s150, %s151
      %p165 = scmp.eq.s32.totalorder %s28, 3
      %p166 = por %p164, %p165
      %p168 = scmp.ne.s32.totalorder %s151, %s167
      %p169 = scmp.eq.s32.totalorder %s28, 0
      %p170 = por %p168, %p169
      %s171 = ssub.s32 %s29, %s41
      %p172 = scmp.eq.s32.totalorder %s171, 0
      %s174 = sadd.s32 %s173, 1
      %s175 = scalar_select %p172, %s173, %s174
      %p178 = pneg %p172
      %p179 = scmp.eq.s32.totalorder %s22, 3
      %p180 = por %p178, %p179
      %p181 = scmp.ne.s32.totalorder %s173, %s176
      %p182 = scmp.eq.s32.totalorder %s22, 0
      %p183 = por %p181, %p182
      %p184 = scmp.ne.s32.totalorder %s173, %s176
      %p185 = scmp.eq.s32.totalorder %s27, 3
      %p186 = por %p184, %p185
      %p187 = scmp.ne.s32.totalorder %s176, %s177
      %p188 = scmp.eq.s32.totalorder %s27, 0
      %p189 = por %p187, %p188
      %p190 = scmp.ne.s32.totalorder %s176, %s177
      %p191 = scmp.eq.s32.totalorder %s28, 3
      %p192 = por %p190, %p191
      %p194 = scmp.ne.s32.totalorder %s177, %s193
      %p195 = scmp.eq.s32.totalorder %s28, 0
      %p196 = por %p194, %p195
      %s197 = ssub.s32 %s29, %s41
      %p198 = scmp.eq.s32.totalorder %s197, 0
      %s200 = sadd.s32 %s199, 1
      %s201 = scalar_select %p198, %s199, %s200
      %p204 = pneg %p198
      %p205 = scmp.eq.s32.totalorder %s22, 3
      %p206 = por %p204, %p205
      %p207 = scmp.ne.s32.totalorder %s199, %s202
      %p208 = scmp.eq.s32.totalorder %s22, 0
      %p209 = por %p207, %p208
      %p210 = scmp.ne.s32.totalorder %s199, %s202
      %p211 = scmp.eq.s32.totalorder %s27, 3
      %p212 = por %p210, %p211
      %p213 = scmp.ne.s32.totalorder %s202, %s203
      %p214 = scmp.eq.s32.totalorder %s27, 0
      %p215 = por %p213, %p214
      %p216 = scmp.ne.s32.totalorder %s202, %s203
      %p217 = scmp.eq.s32.totalorder %s28, 3
      %p218 = por %p216, %p217
      %p220 = scmp.ne.s32.totalorder %s203, %s219
      %p221 = scmp.eq.s32.totalorder %s28, 0
      %p222 = por %p220, %p221
      %p223 = scmp.le.s32.totalorder 1, %s22
      %p224 = scmp.lt.s32.totalorder %s22, 5
      %p225 = pnand %p223, %p224
      %p226 = pneg %p225
      // Predicated region
      $region9: #{tpu_custom_call.1} parent=5 // pred_check
        _
      $region10: #{tpu_custom_call.1} parent=5 // pred_check_branch
        %228 = sbr.rel (%p225) target = $region12
      $region11: #{tpu_custom_call.1} parent=5 // pred_region
        %s229 = ssub.s32 %s22, 1
        // Predicated region
        $region13: #{tpu_custom_call.1} parent=11 // pred_check
          %p230 = pneg %p83
        $region14: #{tpu_custom_call.1} parent=11 // pred_check_branch
          %232 = sbr.rel (%p230) target = $region16
        $region15: #{tpu_custom_call.1} parent=11 // pred_region
          %s234 = ssub.s32 8192, 8192
          %235 = vsyncadd [#allocation8], %s234
          %s236 = sshll.u32 [#allocation7], 4
          %s237 = int_to_ptr.vmem [resolvable:$true] %s236
          %242 = dma.hbm_to_vmem [thread:$0]  %s1, 8192, %s237, [#allocation8], 512, 512, 32
        $region16: #{tpu_custom_call.1} parent=11 // pred_fallthru
          _
        // Predicated region
        $region17: #{tpu_custom_call.1} parent=11 // pred_check
          %p243 = pneg %p109
        $region18: #{tpu_custom_call.1} parent=11 // pred_check_branch
          %245 = sbr.rel (%p243) target = $region20
        $region19: #{tpu_custom_call.1} parent=11 // pred_region
          %s247 = ssub.s32 128, 128
          %248 = vsyncadd [#allocation8], %s247
          %s249 = smul.addr %s31, 128
          %s250 = scalar_lea.hbm %s2, %s249
          %s252 = sshll.u32 [#allocation9], 4
          %s253 = int_to_ptr.vmem [resolvable:$true] %s252
          %255 = dma.hbm_to_vmem [thread:$0]  %s250, 128, %s253, [#allocation8]
        $region20: #{tpu_custom_call.1} parent=11 // pred_fallthru
          _
        // Predicated region
        $region21: #{tpu_custom_call.1} parent=11 // pred_check
          %p256 = pneg %p135
        $region22: #{tpu_custom_call.1} parent=11 // pred_check_branch
          %258 = sbr.rel (%p256) target = $region24
        $region23: #{tpu_custom_call.1} parent=11 // pred_region
          %s260 = ssub.s32 128, 128
          %261 = vsyncadd [#allocation11], %s260
          %s262 = smul.addr %s31, 128
          %s263 = scalar_lea.hbm %s3, %s262
          %s265 = sshll.u32 [#allocation10], 4
          %s266 = int_to_ptr.vmem [resolvable:$true] %s265
          %268 = dma.hbm_to_vmem [thread:$0]  %s263, 128, %s266, [#allocation11]
        $region24: #{tpu_custom_call.1} parent=11 // pred_fallthru
          _
      $region12: #{tpu_custom_call.1} parent=5 // pred_fallthru
        _
      %p269 = scmp.lt.s32.totalorder %s22, 4
      // Predicated region
      $region25: #{tpu_custom_call.1} parent=5 // pred_check
        %p270 = pneg %p269
      $region26: #{tpu_custom_call.1} parent=5 // pred_check_branch
        %272 = sbr.rel (%p270) target = $region28
      $region27: #{tpu_custom_call.1} parent=5 // pred_region
        // Predicated region
        $region29: #{tpu_custom_call.1} parent=27 // pred_check
          %p273 = pneg %p56
        $region30: #{tpu_custom_call.1} parent=27 // pred_check_branch
          %275 = sbr.rel (%p273) target = $region32
        $region31: #{tpu_custom_call.1} parent=27 // pred_region
          %s276 = sand.u32 %s46, 1
          %s277 = scalar_lea.sflag [#allocation5], %s276
          %s278 = sand.u32 %s46, 1
          %s279 = smul.addr %s278, 64
          %s280 = scalar_lea.vmem [#allocation4], %s279
          %s281 = smul.u32 2, %s30
          %s283 = ssub.s32 1024, 1024
          %284 = vsyncadd %s277, %s283
          %s285 = smul.addr %s29, 4
          %s286 = smul.addr %s281, 4
          %s287 = sadd.s32 %s285, %s286
          %s288 = smul.addr %s287, 128
          %s289 = scalar_lea.hbm %s0, %s288
          %s290 = sshll.u32 %s280, 4
          %s291 = int_to_ptr.vmem [resolvable:$true] %s290
          %296 = dma.hbm_to_vmem [thread:$0]  %s289, 1024, %s291, %s277, 512, 512, 32
        $region32: #{tpu_custom_call.1} parent=27 // pred_fallthru
          _
      $region28: #{tpu_custom_call.1} parent=5 // pred_fallthru
        _
      %p297 = scmp.le.s32.totalorder 1, %s22
      %p298 = scmp.lt.s32.totalorder %s22, 5
      %p299 = pnand %p297, %p298
      %p300 = pneg %p299
      // Predicated region
      $region33: #{tpu_custom_call.1} parent=5 // pred_check
        _
      $region34: #{tpu_custom_call.1} parent=5 // pred_check_branch
        %302 = sbr.rel (%p299) target = $region36
      $region35: #{tpu_custom_call.1} parent=5 // pred_region
        %s303 = ssub.s32 %s22, 1
        %s304 = sand.u32 %s49, 1
        %s305 = scalar_lea.sflag [#allocation5], %s304
        %s306 = sand.u32 %s49, 1
        %s307 = smul.addr %s306, 64
        %s308 = scalar_lea.vmem [#allocation4], %s307
        // Predicated region
        $region37: #{tpu_custom_call.1} parent=35 // pred_check
          %p309 = pneg %p62
        $region38: #{tpu_custom_call.1} parent=35 // pred_check_branch
          %311 = sbr.rel (%p309) target = $region40
        $region39: #{tpu_custom_call.1} parent=35 // pred_region
          %312 = dma.done %s305, 1024
        $region40: #{tpu_custom_call.1} parent=35 // pred_fallthru
          _
        // Predicated region
        $region41: #{tpu_custom_call.1} parent=35 // pred_check
          %p313 = pneg %p83
        $region42: #{tpu_custom_call.1} parent=35 // pred_check_branch
          %315 = sbr.rel (%p313) target = $region44
        $region43: #{tpu_custom_call.1} parent=35 // pred_region
          %316 = dma.done [#allocation8], 8192
        $region44: #{tpu_custom_call.1} parent=35 // pred_fallthru
          _
        // Predicated region
        $region45: #{tpu_custom_call.1} parent=35 // pred_check
          %p317 = pneg %p109
        $region46: #{tpu_custom_call.1} parent=35 // pred_check_branch
          %319 = sbr.rel (%p317) target = $region48
        $region47: #{tpu_custom_call.1} parent=35 // pred_region
          %320 = dma.done [#allocation8], 128
        $region48: #{tpu_custom_call.1} parent=35 // pred_fallthru
          _
        // Predicated region
        $region49: #{tpu_custom_call.1} parent=35 // pred_check
          %p321 = pneg %p135
        $region50: #{tpu_custom_call.1} parent=35 // pred_check_branch
          %323 = sbr.rel (%p321) target = $region52
        $region51: #{tpu_custom_call.1} parent=35 // pred_region
          %324 = dma.done [#allocation11], 128
        $region52: #{tpu_custom_call.1} parent=35 // pred_fallthru
          _
        %s325 = sand.u32 %s49, 1
        %s326 = scalar_lea.sflag [#allocation5], %s325
        %s327 = sand.u32 %s49, 1
        %s328 = smul.addr %s327, 64
        %s329 = scalar_lea.vmem [#allocation4], %s328
        %p330 = pneg %p62
        %p331 = pneg %p59
        %p332 = pneg %p83
        %p333 = pneg %p80
        %p334 = pneg %p109
        %p335 = pneg %p106
        %p336 = pneg %p135
        %p337 = pneg %p132
        %p338 = pneg %p163
        %p339 = pneg %p160
        %s340 = sand.u32 %s150, 1
        %s341 = scalar_lea.sflag [#allocation6], %s340
        %s342 = sand.u32 %s150, 1
        %s343 = smul.addr %s342, 16
        %s344 = scalar_lea.vmem [#allocation12], %s343
        %p345 = pneg %p189
        %p346 = pneg %p186
        %p347 = pneg %p215
        %p348 = pneg %p212
        %s349 = smul.u32 2, %s32
        %s350 = smul.u32 2, %s32
        %p351 = scmp.eq.s32.totalorder %s32, 0
        // Predicated region
        $region53: #{tpu_custom_call.1} parent=35 // pred_check
          %p352 = pneg %p351
        $region54: #{tpu_custom_call.1} parent=35 // pred_check_branch
          %354 = sbr.rel (%p352) target = $region56
        $region55: #{tpu_custom_call.1} parent=35 // pred_region
          %v355 = vld [vmem:[#allocation9] sm:$0xff]
          %356 = vst [vmem:[#allocation2] sm:$0xff] %v355
          %v357 = vld [vmem:[#allocation10] sm:$0xff]
          %358 = vst [vmem:[#allocation3] sm:$0xff] %v357
        $region56: #{tpu_custom_call.1} parent=35 // pred_fallthru
          _
        %v359 = vld [vmem:[#allocation7] sm:$0xff]
        %v360 = vld [vmem:[#allocation7 + $0x8] sm:$0xff]
        %v361 = vld [vmem:[#allocation7 + $0x10] sm:$0xff]
        %v362 = vld [vmem:[#allocation7 + $0x18] sm:$0xff]
        %v363 = vld [vmem:[#allocation7 + $0x20] sm:$0xff]
        %v364 = vld [vmem:[#allocation7 + $0x28] sm:$0xff]
        %v365 = vld [vmem:[#allocation7 + $0x30] sm:$0xff]
        %v366 = vld [vmem:[#allocation7 + $0x38] sm:$0xff]
        %v367 = vld [vmem:[#allocation7 + $0x40] sm:$0xff]
        %v368 = vld [vmem:[#allocation7 + $0x48] sm:$0xff]
        %v369 = vld [vmem:[#allocation7 + $0x50] sm:$0xff]
        %v370 = vld [vmem:[#allocation7 + $0x58] sm:$0xff]
        %v371 = vld [vmem:[#allocation7 + $0x60] sm:$0xff]
        %v372 = vld [vmem:[#allocation7 + $0x68] sm:$0xff]
        %v373 = vld [vmem:[#allocation7 + $0x70] sm:$0xff]
        %v374 = vld [vmem:[#allocation7 + $0x78] sm:$0xff]
        %v375 = vld [vmem:[#allocation7 + $0x80] sm:$0xff]
        %v376 = vld [vmem:[#allocation7 + $0x88] sm:$0xff]
        %v377 = vld [vmem:[#allocation7 + $0x90] sm:$0xff]
        %v378 = vld [vmem:[#allocation7 + $0x98] sm:$0xff]
        %v379 = vld [vmem:[#allocation7 + $0xa0] sm:$0xff]
        %v380 = vld [vmem:[#allocation7 + $0xa8] sm:$0xff]
        %v381 = vld [vmem:[#allocation7 + $0xb0] sm:$0xff]
        %v382 = vld [vmem:[#allocation7 + $0xb8] sm:$0xff]
        %v383 = vld [vmem:[#allocation7 + $0xc0] sm:$0xff]
        %v384 = vld [vmem:[#allocation7 + $0xc8] sm:$0xff]
        %v385 = vld [vmem:[#allocation7 + $0xd0] sm:$0xff]
        %v386 = vld [vmem:[#allocation7 + $0xd8] sm:$0xff]
        %v387 = vld [vmem:[#allocation7 + $0xe0] sm:$0xff]
        %v388 = vld [vmem:[#allocation7 + $0xe8] sm:$0xff]
        %v389 = vld [vmem:[#allocation7 + $0xf0] sm:$0xff]
        %v390 = vld [vmem:[#allocation7 + $0xf8] sm:$0xff]
        %v391 = vld [vmem:[#allocation7 + $0x100] sm:$0xff]
        %v392 = vld [vmem:[#allocation7 + $0x108] sm:$0xff]
        %v393 = vld [vmem:[#allocation7 + $0x110] sm:$0xff]
        %v394 = vld [vmem:[#allocation7 + $0x118] sm:$0xff]
        %v395 = vld [vmem:[#allocation7 + $0x120] sm:$0xff]
        %v396 = vld [vmem:[#allocation7 + $0x128] sm:$0xff]
        %v397 = vld [vmem:[#allocation7 + $0x130] sm:$0xff]
        %v398 = vld [vmem:[#allocation7 + $0x138] sm:$0xff]
        %v399 = vld [vmem:[#allocation7 + $0x140] sm:$0xff]
        %v400 = vld [vmem:[#allocation7 + $0x148] sm:$0xff]
        %v401 = vld [vmem:[#allocation7 + $0x150] sm:$0xff]
        %v402 = vld [vmem:[#allocation7 + $0x158] sm:$0xff]
        %v403 = vld [vmem:[#allocation7 + $0x160] sm:$0xff]
        %v404 = vld [vmem:[#allocation7 + $0x168] sm:$0xff]
        %v405 = vld [vmem:[#allocation7 + $0x170] sm:$0xff]
        %v406 = vld [vmem:[#allocation7 + $0x178] sm:$0xff]
        %v407 = vld [vmem:[#allocation7 + $0x180] sm:$0xff]
        %v408 = vld [vmem:[#allocation7 + $0x188] sm:$0xff]
        %v409 = vld [vmem:[#allocation7 + $0x190] sm:$0xff]
        %v410 = vld [vmem:[#allocation7 + $0x198] sm:$0xff]
        %v411 = vld [vmem:[#allocation7 + $0x1a0] sm:$0xff]
        %v412 = vld [vmem:[#allocation7 + $0x1a8] sm:$0xff]
        %v413 = vld [vmem:[#allocation7 + $0x1b0] sm:$0xff]
        %v414 = vld [vmem:[#allocation7 + $0x1b8] sm:$0xff]
        %v415 = vld [vmem:[#allocation7 + $0x1c0] sm:$0xff]
        %v416 = vld [vmem:[#allocation7 + $0x1c8] sm:$0xff]
        %v417 = vld [vmem:[#allocation7 + $0x1d0] sm:$0xff]
        %v418 = vld [vmem:[#allocation7 + $0x1d8] sm:$0xff]
        %v419 = vld [vmem:[#allocation7 + $0x1e0] sm:$0xff]
        %v420 = vld [vmem:[#allocation7 + $0x1e8] sm:$0xff]
        %v421 = vld [vmem:[#allocation7 + $0x1f0] sm:$0xff]
        %v422 = vld [vmem:[#allocation7 + $0x1f8] sm:$0xff]
        %v423 = vld [vmem:[#allocation2] sm:$0xff]
        %v424 = vld [vmem:[#allocation3] sm:$0xff]
        %v425 = vld [vmem:[%s308] sm:$0xff]
        %v426 = vld [vmem:[%s308 + $0x8] sm:$0xff]
        %v427 = vld [vmem:[%s308 + $0x10] sm:$0xff]
        %v428 = vld [vmem:[%s308 + $0x18] sm:$0xff]
        %429 = vmatprep.subr.mxu0 %v420
        %430 = vmatpush1.msra.mxu0 %v419
        %431 = vmatprep.subr.mxu0 %v416
        %432 = vmatpush1.msra.mxu0 %v415
        %433 = vmatprep.subr.mxu0 %v412
        %434 = vmatpush1.msra.mxu0 %v411
        %435 = vmatprep.subr.mxu0 %v408
        %436 = vmatpush1.msra.mxu0 %v407
        %437 = vmatprep.subr.mxu0 %v404
        %438 = vmatpush1.msra.mxu0 %v403
        %439 = vmatprep.subr.mxu0 %v400
        %440 = vmatpush1.msra.mxu0 %v399
        %441 = vmatprep.subr.mxu0 %v396
        %442 = vmatpush1.msra.mxu0 %v395
        %443 = vmatprep.subr.mxu0 %v392
        %444 = vmatpush1.msra.mxu0 %v391
        %445 = vmatprep.subr.mxu0 %v388
        %446 = vmatpush1.msra.mxu0 %v387
        %447 = vmatprep.subr.mxu0 %v384
        %448 = vmatpush1.msra.mxu0 %v383
        %449 = vmatprep.subr.mxu0 %v380
        %450 = vmatpush1.msra.mxu0 %v379
        %451 = vmatprep.subr.mxu0 %v376
        %452 = vmatpush1.msra.mxu0 %v375
        %453 = vmatprep.subr.mxu0 %v372
        %454 = vmatpush1.msra.mxu0 %v371
        %455 = vmatprep.subr.mxu0 %v368
        %456 = vmatpush1.msra.mxu0 %v367
        %457 = vmatprep.subr.mxu0 %v364
        %458 = vmatpush1.msra.mxu0 %v363
        %459 = vmatprep.subr.mxu0 %v360
        %460 = vmatpush1.msra.mxu0 %v359
        %461 = vmatprep.subr.mxu0 0.0
        %462 = vmatpush2.msra.mxu0 0.0
        %463 = vmatprep.subr.mxu0 0.0
        %464 = vmatpush2.msra.mxu0 0.0
        %465 = vmatprep.subr.mxu0 0.0
        %466 = vmatpush2.msra.mxu0 0.0
        %467 = vmatprep.subr.mxu0 0.0
        %468 = vmatpush2.msra.mxu0 0.0
        %469 = vmatprep.subr.mxu0 0.0
        %470 = vmatpush2.msra.mxu0 0.0
        %471 = vmatprep.subr.mxu0 0.0
        %472 = vmatpush2.msra.mxu0 0.0
        %473 = vmatprep.subr.mxu0 0.0
        %474 = vmatpush2.msra.mxu0 0.0
        %475 = vmatprep.subr.mxu0 0.0
        %476 = vmatpush2.msra.mxu0 0.0
        %477 = vmatprep.subr.mxu0 0.0
        %478 = vmatpush2.msra.mxu0 0.0
        %479 = vmatprep.subr.mxu0 0.0
        %480 = vmatpush2.msra.mxu0 0.0
        %481 = vmatprep.subr.mxu0 0.0
        %482 = vmatpush2.msra.mxu0 0.0
        %483 = vmatprep.subr.mxu0 0.0
        %484 = vmatpush2.msra.mxu0 0.0
        %485 = vmatprep.subr.mxu0 0.0
        %486 = vmatpush2.msra.mxu0 0.0
        %487 = vmatprep.subr.mxu0 0.0
        %488 = vmatpush2.msra.mxu0 0.0
        %489 = vmatprep.subr.mxu0 0.0
        %490 = vmatpush2.msra.mxu0 0.0
        %491 = vmatprep.subr.mxu0 0.0
        %492 = vmatpush2.msra.mxu0 0.0
        %493 = vmatprep.mubr.f32.mxu0 0.0
        %494 = vmatmul.mubr.f32.gmra.mxu0 %v423
        %v495 = vpop.f32.mrf.mxu0
        %v496 = vadd.f32 0.0, %v495
        %v497 = vpop.f32.mrf.mxu0
        %v498 = vadd.f32 0.0, %v497
        %499 = vdwg.mxu0
        %500 = vmatprep.subr.mxu0 %v422
        %501 = vmatpush1.msra.mxu0 %v421
        %502 = vmatprep.subr.mxu0 %v418
        %503 = vmatpush1.msra.mxu0 %v417
        %504 = vmatprep.subr.mxu0 %v414
        %505 = vmatpush1.msra.mxu0 %v413
        %506 = vmatprep.subr.mxu0 %v410
        %507 = vmatpush1.msra.mxu0 %v409
        %508 = vmatprep.subr.mxu0 %v406
        %509 = vmatpush1.msra.mxu0 %v405
        %510 = vmatprep.subr.mxu0 %v402
        %511 = vmatpush1.msra.mxu0 %v401
        %512 = vmatprep.subr.mxu0 %v398
        %513 = vmatpush1.msra.mxu0 %v397
        %514 = vmatprep.subr.mxu0 %v394
        %515 = vmatpush1.msra.mxu0 %v393
        %516 = vmatprep.subr.mxu0 %v390
        %517 = vmatpush1.msra.mxu0 %v389
        %518 = vmatprep.subr.mxu0 %v386
        %519 = vmatpush1.msra.mxu0 %v385
        %520 = vmatprep.subr.mxu0 %v382
        %521 = vmatpush1.msra.mxu0 %v381
        %522 = vmatprep.subr.mxu0 %v378
        %523 = vmatpush1.msra.mxu0 %v377
        %524 = vmatprep.subr.mxu0 %v374
        %525 = vmatpush1.msra.mxu0 %v373
        %526 = vmatprep.subr.mxu0 %v370
        %527 = vmatpush1.msra.mxu0 %v369
        %528 = vmatprep.subr.mxu0 %v366
        %529 = vmatpush1.msra.mxu0 %v365
        %530 = vmatprep.subr.mxu0 %v362
        %531 = vmatpush1.msra.mxu0 %v361
        %532 = vmatprep.subr.mxu0 0.0
        %533 = vmatpush2.msra.mxu0 0.0
        %534 = vmatprep.subr.mxu0 0.0
        %535 = vmatpush2.msra.mxu0 0.0
        %536 = vmatprep.subr.mxu0 0.0
        %537 = vmatpush2.msra.mxu0 0.0
        %538 = vmatprep.subr.mxu0 0.0
        %539 = vmatpush2.msra.mxu0 0.0
        %540 = vmatprep.subr.mxu0 0.0
        %541 = vmatpush2.msra.mxu0 0.0
        %542 = vmatprep.subr.mxu0 0.0
        %543 = vmatpush2.msra.mxu0 0.0
        %544 = vmatprep.subr.mxu0 0.0
        %545 = vmatpush2.msra.mxu0 0.0
        %546 = vmatprep.subr.mxu0 0.0
        %547 = vmatpush2.msra.mxu0 0.0
        %548 = vmatprep.subr.mxu0 0.0
        %549 = vmatpush2.msra.mxu0 0.0
        %550 = vmatprep.subr.mxu0 0.0
        %551 = vmatpush2.msra.mxu0 0.0
        %552 = vmatprep.subr.mxu0 0.0
        %553 = vmatpush2.msra.mxu0 0.0
        %554 = vmatprep.subr.mxu0 0.0
        %555 = vmatpush2.msra.mxu0 0.0
        %556 = vmatprep.subr.mxu0 0.0
        %557 = vmatpush2.msra.mxu0 0.0
        %558 = vmatprep.subr.mxu0 0.0
        %559 = vmatpush2.msra.mxu0 0.0
        %560 = vmatprep.subr.mxu0 0.0
        %561 = vmatpush2.msra.mxu0 0.0
        %562 = vmatprep.subr.mxu0 0.0
        %563 = vmatpush2.msra.mxu0 0.0
        %564 = vmatprep.mubr.f32.mxu0 0.0
        %565 = vmatmul.mubr.f32.gmra.mxu0 %v423
        %v566 = vpop.f32.mrf.mxu0
        %v567 = vadd.f32 0.0, %v566
        %v568 = vpop.f32.mrf.mxu0
        %v569 = vadd.f32 0.0, %v568
        %570 = vdwg.mxu0
        %v571 = vadd.f32 %v425, %v496
        %v572 = vadd.f32 %v426, %v498
        %v573 = vadd.f32 %v427, %v567
        %v574 = vadd.f32 %v428, %v569
        %v575 = vmul.f32 %v571, 0.5
        %v576 = vtanh.pop %v575
        %v577 = vadd.f32 %v576, 1.0
        %v578 = vmul.f32 %v577, 0.5
        %v579 = vmul.f32 %v572, 0.5
        %v580 = vtanh.pop %v579
        %v581 = vadd.f32 %v580, 1.0
        %v582 = vmul.f32 %v581, 0.5
        %v583 = vtanh.pop %v573
        %v584 = vmul.f32 %v574, 0.5
        %v585 = vtanh.pop %v584
        %v586 = vadd.f32 %v585, 1.0
        %v587 = vmul.f32 %v586, 0.5
        %v588 = vmul.f32 %v582, %v424
        %v589 = vmul.f32 %v578, %v583
        %v590 = vadd.f32 %v588, %v589
        %v591 = vtanh.pop %v590
        %v592 = vmul.f32 %v587, %v591
        %593 = vst [vmem:[%s344] sm:$0xff] %v592
        %s594 = scalar_lea.vmem %s308, 32 [#allocation4]
        %v595 = vld [vmem:[%s594] sm:$0xff]
        %v596 = vld [vmem:[%s594 + $0x8] sm:$0xff]
        %v597 = vld [vmem:[%s594 + $0x10] sm:$0xff]
        %v598 = vld [vmem:[%s594 + $0x18] sm:$0xff]
        %599 = vmatprep.subr.mxu0 %v420
        %600 = vmatpush1.msra.mxu0 %v419
        %601 = vmatprep.subr.mxu0 %v416
        %602 = vmatpush1.msra.mxu0 %v415
        %603 = vmatprep.subr.mxu0 %v412
        %604 = vmatpush1.msra.mxu0 %v411
        %605 = vmatprep.subr.mxu0 %v408
        %606 = vmatpush1.msra.mxu0 %v407
        %607 = vmatprep.subr.mxu0 %v404
        %608 = vmatpush1.msra.mxu0 %v403
        %609 = vmatprep.subr.mxu0 %v400
        %610 = vmatpush1.msra.mxu0 %v399
        %611 = vmatprep.subr.mxu0 %v396
        %612 = vmatpush1.msra.mxu0 %v395
        %613 = vmatprep.subr.mxu0 %v392
        %614 = vmatpush1.msra.mxu0 %v391
        %615 = vmatprep.subr.mxu0 %v388
        %616 = vmatpush1.msra.mxu0 %v387
        %617 = vmatprep.subr.mxu0 %v384
        %618 = vmatpush1.msra.mxu0 %v383
        %619 = vmatprep.subr.mxu0 %v380
        %620 = vmatpush1.msra.mxu0 %v379
        %621 = vmatprep.subr.mxu0 %v376
        %622 = vmatpush1.msra.mxu0 %v375
        %623 = vmatprep.subr.mxu0 %v372
        %624 = vmatpush1.msra.mxu0 %v371
        %625 = vmatprep.subr.mxu0 %v368
        %626 = vmatpush1.msra.mxu0 %v367
        %627 = vmatprep.subr.mxu0 %v364
        %628 = vmatpush1.msra.mxu0 %v363
        %629 = vmatprep.subr.mxu0 %v360
        %630 = vmatpush1.msra.mxu0 %v359
        %631 = vmatprep.subr.mxu0 0.0
        %632 = vmatpush2.msra.mxu0 0.0
        %633 = vmatprep.subr.mxu0 0.0
        %634 = vmatpush2.msra.mxu0 0.0
        %635 = vmatprep.subr.mxu0 0.0
        %636 = vmatpush2.msra.mxu0 0.0
        %637 = vmatprep.subr.mxu0 0.0
        %638 = vmatpush2.msra.mxu0 0.0
        %639 = vmatprep.subr.mxu0 0.0
        %640 = vmatpush2.msra.mxu0 0.0
        %641 = vmatprep.subr.mxu0 0.0
        %642 = vmatpush2.msra.mxu0 0.0
        %643 = vmatprep.subr.mxu0 0.0
        %644 = vmatpush2.msra.mxu0 0.0
        %645 = vmatprep.subr.mxu0 0.0
        %646 = vmatpush2.msra.mxu0 0.0
        %647 = vmatprep.subr.mxu0 0.0
        %648 = vmatpush2.msra.mxu0 0.0
        %649 = vmatprep.subr.mxu0 0.0
        %650 = vmatpush2.msra.mxu0 0.0
        %651 = vmatprep.subr.mxu0 0.0
        %652 = vmatpush2.msra.mxu0 0.0
        %653 = vmatprep.subr.mxu0 0.0
        %654 = vmatpush2.msra.mxu0 0.0
        %655 = vmatprep.subr.mxu0 0.0
        %656 = vmatpush2.msra.mxu0 0.0
        %657 = vmatprep.subr.mxu0 0.0
        %658 = vmatpush2.msra.mxu0 0.0
        %659 = vmatprep.subr.mxu0 0.0
        %660 = vmatpush2.msra.mxu0 0.0
        %661 = vmatprep.subr.mxu0 0.0
        %662 = vmatpush2.msra.mxu0 0.0
        %663 = vmatprep.mubr.f32.mxu0 0.0
        %664 = vmatmul.mubr.f32.gmra.mxu0 %v592
        %v665 = vpop.f32.mrf.mxu0
        %v666 = vadd.f32 0.0, %v665
        %v667 = vpop.f32.mrf.mxu0
        %v668 = vadd.f32 0.0, %v667
        %669 = vdwg.mxu0
        %670 = vmatprep.subr.mxu0 %v422
        %671 = vmatpush1.msra.mxu0 %v421
        %672 = vmatprep.subr.mxu0 %v418
        %673 = vmatpush1.msra.mxu0 %v417
        %674 = vmatprep.subr.mxu0 %v414
        %675 = vmatpush1.msra.mxu0 %v413
        %676 = vmatprep.subr.mxu0 %v410
        %677 = vmatpush1.msra.mxu0 %v409
        %678 = vmatprep.subr.mxu0 %v406
        %679 = vmatpush1.msra.mxu0 %v405
        %680 = vmatprep.subr.mxu0 %v402
        %681 = vmatpush1.msra.mxu0 %v401
        %682 = vmatprep.subr.mxu0 %v398
        %683 = vmatpush1.msra.mxu0 %v397
        %684 = vmatprep.subr.mxu0 %v394
        %685 = vmatpush1.msra.mxu0 %v393
        %686 = vmatprep.subr.mxu0 %v390
        %687 = vmatpush1.msra.mxu0 %v389
        %688 = vmatprep.subr.mxu0 %v386
        %689 = vmatpush1.msra.mxu0 %v385
        %690 = vmatprep.subr.mxu0 %v382
        %691 = vmatpush1.msra.mxu0 %v381
        %692 = vmatprep.subr.mxu0 %v378
        %693 = vmatpush1.msra.mxu0 %v377
        %694 = vmatprep.subr.mxu0 %v374
        %695 = vmatpush1.msra.mxu0 %v373
        %696 = vmatprep.subr.mxu0 %v370
        %697 = vmatpush1.msra.mxu0 %v369
        %698 = vmatprep.subr.mxu0 %v366
        %699 = vmatpush1.msra.mxu0 %v365
        %700 = vmatprep.subr.mxu0 %v362
        %701 = vmatpush1.msra.mxu0 %v361
        %702 = vmatprep.subr.mxu0 0.0
        %703 = vmatpush2.msra.mxu0 0.0
        %704 = vmatprep.subr.mxu0 0.0
        %705 = vmatpush2.msra.mxu0 0.0
        %706 = vmatprep.subr.mxu0 0.0
        %707 = vmatpush2.msra.mxu0 0.0
        %708 = vmatprep.subr.mxu0 0.0
        %709 = vmatpush2.msra.mxu0 0.0
        %710 = vmatprep.subr.mxu0 0.0
        %711 = vmatpush2.msra.mxu0 0.0
        %712 = vmatprep.subr.mxu0 0.0
        %713 = vmatpush2.msra.mxu0 0.0
        %714 = vmatprep.subr.mxu0 0.0
        %715 = vmatpush2.msra.mxu0 0.0
        %716 = vmatprep.subr.mxu0 0.0
        %717 = vmatpush2.msra.mxu0 0.0
        %718 = vmatprep.subr.mxu0 0.0
        %719 = vmatpush2.msra.mxu0 0.0
        %720 = vmatprep.subr.mxu0 0.0
        %721 = vmatpush2.msra.mxu0 0.0
        %722 = vmatprep.subr.mxu0 0.0
        %723 = vmatpush2.msra.mxu0 0.0
        %724 = vmatprep.subr.mxu0 0.0
        %725 = vmatpush2.msra.mxu0 0.0
        %726 = vmatprep.subr.mxu0 0.0
        %727 = vmatpush2.msra.mxu0 0.0
        %728 = vmatprep.subr.mxu0 0.0
        %729 = vmatpush2.msra.mxu0 0.0
        %730 = vmatprep.subr.mxu0 0.0
        %731 = vmatpush2.msra.mxu0 0.0
        %732 = vmatprep.subr.mxu0 0.0
        %733 = vmatpush2.msra.mxu0 0.0
        %734 = vmatprep.mubr.f32.mxu0 0.0
        %735 = vmatmul.mubr.f32.gmra.mxu0 %v592
        %v736 = vpop.f32.mrf.mxu0
        %v737 = vadd.f32 0.0, %v736
        %v738 = vpop.f32.mrf.mxu0
        %v739 = vadd.f32 0.0, %v738
        %740 = vdwg.mxu0
        %v741 = vadd.f32 %v595, %v666
        %v742 = vadd.f32 %v596, %v668
        %v743 = vadd.f32 %v597, %v737
        %v744 = vadd.f32 %v598, %v739
        %v745 = vmul.f32 %v741, 0.5
        %v746 = vtanh.pop %v745
        %v747 = vadd.f32 %v746, 1.0
        %v748 = vmul.f32 %v747, 0.5
        %v749 = vmul.f32 %v742, 0.5
        %v750 = vtanh.pop %v749
        %v751 = vadd.f32 %v750, 1.0
        %v752 = vmul.f32 %v751, 0.5
        %v753 = vtanh.pop %v743
        %v754 = vmul.f32 %v744, 0.5
        %v755 = vtanh.pop %v754
        %v756 = vadd.f32 %v755, 1.0
        %v757 = vmul.f32 %v756, 0.5
        %v758 = vmul.f32 %v752, %v590
        %v759 = vmul.f32 %v748, %v753
        %v760 = vadd.f32 %v758, %v759
        %v761 = vtanh.pop %v760
        %v762 = vmul.f32 %v757, %v761
        %s763 = scalar_lea.vmem %s344, 8 [#allocation12]
        %764 = vst [vmem:[%s763] sm:$0xff] %v762
        %765 = vst [vmem:[#allocation2] sm:$0xff] %v762
        %766 = vst [vmem:[#allocation3] sm:$0xff] %v760
        %p767 = scmp.eq.s32.totalorder %s32, 3
        // Predicated region
        $region57: #{tpu_custom_call.1} parent=35 // pred_check
          %p768 = pneg %p767
        $region58: #{tpu_custom_call.1} parent=35 // pred_check_branch
          %770 = sbr.rel (%p768) target = $region60
        $region59: #{tpu_custom_call.1} parent=35 // pred_region
          %771 = vst [vmem:[#allocation13] sm:$0xff] %v762
          %772 = vst [vmem:[#allocation15] sm:$0xff] %v760
        $region60: #{tpu_custom_call.1} parent=35 // pred_fallthru
          _
        %s773 = sand.u32 %s150, 1
        %s774 = scalar_lea.sflag [#allocation6], %s773
        %s775 = sand.u32 %s150, 1
        %s776 = smul.addr %s775, 16
        %s777 = scalar_lea.vmem [#allocation12], %s776
        // Predicated region
        $region61: #{tpu_custom_call.1} parent=35 // pred_check
          %p778 = pneg %p160
        $region62: #{tpu_custom_call.1} parent=35 // pred_check_branch
          %780 = sbr.rel (%p778) target = $region64
        $region63: #{tpu_custom_call.1} parent=35 // pred_region
          %s781 = smul.u32 2, %s32
          %s783 = ssub.s32 256, 256
          %784 = vsyncadd %s774, %s783
          %s785 = sadd.s32 %s31, %s781
          %s786 = smul.addr %s785, 128
          %s787 = scalar_lea.hbm %s4, %s786
          %s788 = sshll.u32 %s777, 4
          %s789 = int_to_ptr.vmem [resolvable:$true] %s788
          %794 = dma.vmem_to_hbm [thread:$0]  %s789, 256, %s787, %s774, 128, 128, 8
        $region64: #{tpu_custom_call.1} parent=35 // pred_fallthru
          _
        // Predicated region
        $region65: #{tpu_custom_call.1} parent=35 // pred_check
          %p795 = pneg %p186
        $region66: #{tpu_custom_call.1} parent=35 // pred_check_branch
          %797 = sbr.rel (%p795) target = $region68
        $region67: #{tpu_custom_call.1} parent=35 // pred_region
          %s799 = ssub.s32 128, 128
          %800 = vsyncadd [#allocation14], %s799
          %s801 = smul.addr %s31, 128
          %s802 = scalar_lea.hbm %s5, %s801
          %s804 = sshll.u32 [#allocation13], 4
          %s805 = int_to_ptr.vmem [resolvable:$true] %s804
          %807 = dma.vmem_to_hbm [thread:$0]  %s805, 128, %s802, [#allocation14]
        $region68: #{tpu_custom_call.1} parent=35 // pred_fallthru
          _
        // Predicated region
        $region69: #{tpu_custom_call.1} parent=35 // pred_check
          %p808 = pneg %p212
        $region70: #{tpu_custom_call.1} parent=35 // pred_check_branch
          %810 = sbr.rel (%p808) target = $region72
        $region71: #{tpu_custom_call.1} parent=35 // pred_region
          %s812 = ssub.s32 128, 128
          %813 = vsyncadd [#allocation14], %s812
          %s814 = smul.addr %s31, 128
          %s815 = scalar_lea.hbm %s6, %s814
          %s817 = sshll.u32 [#allocation15], 4
          %s818 = int_to_ptr.vmem [resolvable:$true] %s817
          %820 = dma.vmem_to_hbm [thread:$0]  %s818, 128, %s815, [#allocation14]
        $region72: #{tpu_custom_call.1} parent=35 // pred_fallthru
          _
        // Predicated region
        $region73: #{tpu_custom_call.1} parent=35 // pred_check
          %p821 = pneg %p186
        $region74: #{tpu_custom_call.1} parent=35 // pred_check_branch
          %823 = sbr.rel (%p821) target = $region76
        $region75: #{tpu_custom_call.1} parent=35 // pred_region
          %824 = dma.done [#allocation14], 128
        $region76: #{tpu_custom_call.1} parent=35 // pred_fallthru
          _
        // Predicated region
        $region77: #{tpu_custom_call.1} parent=35 // pred_check
          %p825 = pneg %p212
        $region78: #{tpu_custom_call.1} parent=35 // pred_check_branch
          %827 = sbr.rel (%p825) target = $region80
        $region79: #{tpu_custom_call.1} parent=35 // pred_region
          %828 = dma.done [#allocation14], 128
        $region80: #{tpu_custom_call.1} parent=35 // pred_fallthru
          _
      $region36: #{tpu_custom_call.1} parent=5 // pred_fallthru
        _
      %p829 = scmp.le.s32.totalorder 2, %s22
      // Predicated region
      $region81: #{tpu_custom_call.1} parent=5 // pred_check
        %p830 = pneg %p829
      $region82: #{tpu_custom_call.1} parent=5 // pred_check_branch
        %832 = sbr.rel (%p830) target = $region84
      $region83: #{tpu_custom_call.1} parent=5 // pred_region
        %s833 = ssub.s32 %s22, 2
        // Predicated region
        $region85: #{tpu_custom_call.1} parent=83 // pred_check
          %p834 = pneg %p166
        $region86: #{tpu_custom_call.1} parent=83 // pred_check_branch
          %836 = sbr.rel (%p834) target = $region88
        $region87: #{tpu_custom_call.1} parent=83 // pred_region
          %s837 = sand.u32 %s151, 1
          %s838 = scalar_lea.sflag [#allocation6], %s837
          %s839 = sand.u32 %s151, 1
          %s840 = smul.addr %s839, 16
          %s841 = scalar_lea.vmem [#allocation12], %s840
          %842 = dma.done %s838, 256
        $region88: #{tpu_custom_call.1} parent=83 // pred_fallthru
          _
      $region84: #{tpu_custom_call.1} parent=5 // pred_fallthru
        _
    $region6: #{tpu_custom_call.1} parent=1 // loop_footer
      %s26 = sadd.s32 1, %s22
    $region7: #{tpu_custom_call.1} parent=1 // loop_footer_branch
      %21 = sbr.rel target = $region3
    $region8: #{tpu_custom_call.1} parent=1 // loop_exit
      _
    %843 = vsyncpa [#allocation5], 1
    %s844 = scalar_lea.sflag [#allocation5], 1
    %845 = vsyncpa %s844, 1
    %846 = vsyncpa [#allocation8], 1
    %847 = vsyncpa [#allocation11], 1
    %848 = vsyncpa [#allocation6], 1
    %s849 = scalar_lea.sflag [#allocation6], 1
    %850 = vsyncpa %s849, 1
    %851 = vsyncpa [#allocation14], 1

</llo_original>
